<compile_context>
chip_gen: v5e
topology: v5e:2x2
jax: 0.10.0
libtpu: 0.0.40
codegen_flags: <defaults>
</compile_context>

<pallas_src>
import functools

import jax
import jax.numpy as jnp
import numpy as np
from jax.experimental import pallas as pl
from jax.experimental.pallas import tpu as pltpu


def _soft_hist2d_kernel(x_ref, y_ref, o_ref, acc_ref, *,
                        half_sigma, delta, vmin, bins, tb, unroll, use_bf16):
    # x_ref, y_ref: (tb, td) f32 blocks; o_ref: (tb, bins, bins) f32 block;
    # acc_ref:      (tb, bins, bins) f32 VMEM scratch, resident across the D axis.
    k = pl.program_id(1)
    nk = pl.num_programs(1)

    @pl.when(k == 0)
    def _init():
        acc_ref[...] = jnp.zeros_like(acc_ref)

    # Scaled bin edges  edges[b] = 0.5*sigma*(vmin + delta*b),  b = 0..bins
    # (compile-time constant built from an in-kernel iota; no HBM input needed).
    idx = jax.lax.broadcasted_iota(jnp.int32, (bins + 1, 1), 0).astype(jnp.float32)
    edges = half_sigma * (vmin + delta * idx)                     # (bins+1, 1)

    def row(t, carry):
        hx = half_sigma * x_ref[pl.ds(t, 1), :]                   # (1, td)
        hy = half_sigma * y_ref[pl.ds(t, 1), :]                   # (1, td)
        ax = hx - edges                                           # (bins+1, td)
        ay = hy - edges
        if use_bf16:                                              # optional v6e/v7x path
            ax = ax.astype(jnp.bfloat16)
            ay = ay.astype(jnp.bfloat16)

        # One EUP transcendental per (edge, sample); edges are shared between
        # adjacent bins so this is (bins+1) rows, not 2*bins.
        tx = jnp.tanh(ax).astype(jnp.float32)                     # (bins+1, td)
        ty = jnp.tanh(ay).astype(jnp.float32)

        # w[b] = sigmoid(s(x-e_b)) - sigmoid(s(x-e_{b+1})) = 0.5*(T[b] - T[b+1]);
        # the 0.5*0.5 factor is applied once to the (bins,bins) result at the end.
        wx = tx[:bins, :] - tx[1:, :]                             # (bins, td)
        wy = ty[:bins, :] - ty[1:, :]
        if use_bf16:
            wx = wx.astype(jnp.bfloat16)
            wy = wy.astype(jnp.bfloat16)

        # Partial joint histogram for this D chunk: wx @ wy.T on the MXU, f32 acc.
        z = jax.lax.dot_general(wx, wy, (((1,), (1,)), ((), ())),
                                preferred_element_type=jnp.float32)
        acc_ref[t] += z                                           # (bins, bins)
        return carry

    jax.lax.fori_loop(0, tb, row, 0, unroll=unroll)

    @pl.when(k == nk - 1)
    def _finalize():
        o_ref[...] = (0.25 * acc_ref[...]).astype(o_ref.dtype)


def _pick_td(D, block_d):
    for cand in (512, 384, 256, 128):
        if cand <= block_d and D % cand == 0:
            return cand
    return D   # full-D block is always legal (block dim == array dim)


def _vmem_limit_bytes(tb, td, bins, unroll):
    f32 = 4
    in_bufs = 2 * 2 * tb * td * f32                  # x & y blocks, double-buffered
    out_bufs = 2 * tb * bins * bins * f32            # output block, double-buffered
    acc = tb * bins * bins * f32                     # accumulator scratch
    live_rows = max(1, min(unroll, tb)) + 1          # overlapped row working sets
    work = live_rows * 6 * (bins + 1) * td * f32     # tx/ty/wx/wy/args spill space
    total = in_bufs + out_bufs + acc + work
    # Never go below the 32 MiB scoped default; cap at 64 MiB (v7x physical VMEM).
    return int(min(64 * 2**20, max(32 * 2**20, 2 * total)))


def soft_histogram2d(x, y, *, bins=64, vmin=0.0, vmax=1.0, sigma=10.0,
                     block_d=512, unroll=2, compute_dtype=jnp.float32):
    assert x.shape == y.shape, "(SoftHistogram2D) x and y sizes do not match"
    x = jnp.asarray(x, jnp.float32)
    y = jnp.asarray(y, jnp.float32)
    assert x.ndim == 2
    N, D = x.shape
    delta = float(vmax - vmin) / float(bins)
    use_bf16 = jnp.dtype(compute_dtype) == jnp.dtype(jnp.bfloat16)

    # --- batch tiling: bound per-step block at 8 sublane-aligned rows ---------
    if N >= 8:
        tb = 8
        n_pad = (-N) % 8
        if n_pad:
            x = jnp.pad(x, ((0, n_pad), (0, 0)), constant_values=float(vmin))
            y = jnp.pad(y, ((0, n_pad), (0, 0)), constant_values=float(vmin))
    else:
        tb = N
        n_pad = 0
    n_rows = N + n_pad

    # --- contraction (D) tiling ----------------------------------------------
    td = _pick_td(D, block_d)
    grid = (n_rows // tb, D // td)   # reduction axis last

    kernel = functools.partial(
        _soft_hist2d_kernel,
        half_sigma=0.5 * float(sigma),
        delta=delta,
        vmin=float(vmin),
        bins=int(bins),
        tb=int(tb),
        unroll=int(unroll),
        use_bf16=bool(use_bf16),
    )

    out = pl.pallas_call(
        kernel,
        out_shape=jax.ShapeDtypeStruct((n_rows, bins, bins), jnp.float32),
        grid_spec=pltpu.PrefetchScalarGridSpec(
            num_scalar_prefetch=0,
            grid=grid,
            in_specs=[
                pl.BlockSpec((tb, td), lambda b, k: (b, k)),   # x rows, D chunk k
                pl.BlockSpec((tb, td), lambda b, k: (b, k)),   # y rows, D chunk k
            ],
            out_specs=pl.BlockSpec((tb, bins, bins), lambda b, k: (b, 0, 0)),
            scratch_shapes=[pltpu.VMEM((tb, bins, bins), jnp.float32)],
        ),
        compiler_params=pltpu.CompilerParams(
            dimension_semantics=("parallel", "arbitrary"),
            vmem_limit_bytes=_vmem_limit_bytes(tb, td, bins, unroll),
        ),
    )(x, y)

    return out[:N] if n_pad else out


def _reference(x, y, *, bins, vmin, vmax, sigma):
    # Faithful to the PyTorch module (sigmoid-difference soft binning).
    delta = float(vmax - vmin) / float(bins)
    centers = vmin + delta * (jnp.arange(bins, dtype=jnp.float32) + 0.5)
    xd = x[:, None, :] - centers[None, :, None]
    yd = y[:, None, :] - centers[None, :, None]
    wx = jax.nn.sigmoid(sigma * (xd + delta / 2)) - jax.nn.sigmoid(sigma * (xd - delta / 2))
    wy = jax.nn.sigmoid(sigma * (yd + delta / 2)) - jax.nn.sigmoid(sigma * (yd - delta / 2))
    return jnp.einsum("nbd,ncd->nbc", wx, wy)


def _check(N, D, bins, sigma, vmin, vmax, seed, block_d=512, atol=1e-4):
    key = jax.random.PRNGKey(seed)
    kx, ky = jax.random.split(key)
    x = jax.random.uniform(kx, (N, D), dtype=jnp.float32, minval=vmin, maxval=vmax)
    y = jax.random.uniform(ky, (N, D), dtype=jnp.float32, minval=vmin, maxval=vmax)

    z = soft_histogram2d(x, y, bins=bins, vmin=vmin, vmax=vmax, sigma=sigma,
                         block_d=block_d)
    z = jax.block_until_ready(z)
    assert z.shape == (N, bins, bins)

    z_ref = _reference(x, y, bins=bins, vmin=vmin, vmax=vmax, sigma=sigma)
    # tanh identity is mathematically exact; tolerance covers f32 transcendental
    # ULPs accumulated over the (chunked) D-length contraction.
    np.testing.assert_allclose(np.asarray(z), np.asarray(z_ref), rtol=1e-5, atol=atol)


if __name__ == "__main__":
    BINS, SIGMA, VMIN, VMAX = 64, 10.0, 0.0, 1.0

    # 1) Tiny batch (tb == N == 2, single grid step) — e.g. two flattened 16x16 images.
    _check(N=2, D=256, bins=BINS, sigma=SIGMA, vmin=VMIN, vmax=VMAX, seed=0, atol=1e-4)

    # 2) Padded batch (12 -> 16 rows, 2 parallel steps) with 2 D-chunks (block_d=256):
    #    exercises the megacore-parallel axis, the VMEM accumulator across the
    #    "arbitrary" D axis, and the padded-row slice-off.
    _check(N=12, D=512, bins=BINS, sigma=SIGMA, vmin=VMIN, vmax=VMAX, seed=1,
           block_d=256, atol=3e-4)

    # 3) bf16 compute-path smoke test (v6e/v7x fast path; not held to f32 tolerance).
    key = jax.random.PRNGKey(2)
    kx, ky = jax.random.split(key)
    xb = jax.random.uniform(kx, (8, 512), dtype=jnp.float32, minval=VMIN, maxval=VMAX)
    yb = jax.random.uniform(ky, (8, 512), dtype=jnp.float32, minval=VMIN, maxval=VMAX)
    zb = jax.block_until_ready(
        soft_histogram2d(xb, yb, bins=BINS, vmin=VMIN, vmax=VMAX, sigma=SIGMA,
                         compute_dtype=jnp.bfloat16))
    assert zb.shape == (8, BINS, BINS)
    assert bool(jnp.isfinite(zb).all())

    print("KERNEL_OK")
</pallas_src>

<mosaic_0001>
module attributes {stable_mosaic.version = 11 : i64} {
  func.func @_soft_hist2d_kernel(%arg0: i32, %arg1: i32, %arg2: memref<2x256xf32, #tpu.memory_space<vmem>>, %arg3: memref<2x256xf32, #tpu.memory_space<vmem>>, %arg4: memref<2x64x64xf32, #tpu.memory_space<vmem>>, %arg5: memref<2x64x64xf32, #tpu.memory_space<vmem>>) attributes {dimension_semantics = [#tpu.dimension_semantics<parallel>, #tpu.dimension_semantics<arbitrary>], iteration_bounds = array<i64: 1, 1>, scalar_prefetch = 0 : i64, scratch_operands = 1 : i64, tpu.core_type = #tpu.core_type<tc>, window_params = [{transform_indices = @transform_0, window_bounds = array<i64: 2, 256>}, {transform_indices = @transform_1, window_bounds = array<i64: 2, 256>}, {transform_indices = @transform_2, window_bounds = array<i64: 2, 64, 64>}]} {
    %c0_i32 = arith.constant 0 : i32
    %0 = arith.cmpi eq, %arg1, %c0_i32 : i32
    %1 = arith.extui %0 : i1 to i32
    %c0_i32_0 = arith.constant 0 : i32
    %2 = arith.cmpi ne, %1, %c0_i32_0 : i32
    scf.if %2 {
      %cst_23 = arith.constant 0.000000e+00 : f32
      %76 = vector.broadcast %cst_23 : f32 to vector<2x64x64xf32>
      %c0_24 = arith.constant 0 : index
      %c0_25 = arith.constant 0 : index
      %c0_26 = arith.constant 0 : index
      %77 = vector.load %arg5[%c0_24, %c0_25, %c0_26] : memref<2x64x64xf32, #tpu.memory_space<vmem>>, vector<2x64x64xf32>
      tpu.vector_store %arg5[%c0_24, %c0_25, %c0_26], %76 {strides = array<i32>} : memref<2x64x64xf32, #tpu.memory_space<vmem>>, vector<2x64x64xf32>,
    } else {
    }
    %3 = tpu.iota {dimensions = array<i32: 0>} : vector<65x1xi32>
    %4 = arith.sitofp %3 : vector<65x1xi32> to vector<65x1xf32>
    %cst = arith.constant 1.562500e-02 : f32
    %5 = vector.broadcast %cst : f32 to vector<65x1xf32>
    %6 = arith.mulf %5, %4 : vector<65x1xf32>
    %cst_1 = arith.constant 0.000000e+00 : f32
    %7 = vector.broadcast %cst_1 : f32 to vector<65x1xf32>
    %8 = arith.addf %7, %6 : vector<65x1xf32>
    %cst_2 = arith.constant 5.000000e+00 : f32
    %9 = vector.broadcast %cst_2 : f32 to vector<65x1xf32>
    %10 = arith.mulf %9, %8 : vector<65x1xf32>
    %c0_i32_3 = arith.constant 0 : i32
    %11 = arith.index_cast %c0_i32_3 : i32 to index
    %c0 = arith.constant 0 : index
    %12 = vector.load %arg2[%11, %c0] : memref<2x256xf32, #tpu.memory_space<vmem>>, vector<1x256xf32>
    %cst_4 = arith.constant 5.000000e+00 : f32
    %13 = vector.broadcast %cst_4 : f32 to vector<1x256xf32>
    %14 = arith.mulf %13, %12 : vector<1x256xf32>
    %15 = arith.index_cast %c0_i32_3 : i32 to index
    %c0_5 = arith.constant 0 : index
    %16 = vector.load %arg3[%15, %c0_5] : memref<2x256xf32, #tpu.memory_space<vmem>>, vector<1x256xf32>
    %cst_6 = arith.constant 5.000000e+00 : f32
    %17 = vector.broadcast %cst_6 : f32 to vector<1x256xf32>
    %18 = arith.mulf %17, %16 : vector<1x256xf32>
    %19 = vector.broadcast %14 : vector<1x256xf32> to vector<65x256xf32>
    %20 = vector.broadcast %10 : vector<65x1xf32> to vector<65x256xf32>
    %21 = arith.subf %19, %20 : vector<65x256xf32>
    %22 = vector.broadcast %18 : vector<1x256xf32> to vector<65x256xf32>
    %23 = vector.broadcast %10 : vector<65x1xf32> to vector<65x256xf32>
    %24 = arith.subf %22, %23 : vector<65x256xf32>
    %25 = math.tanh %21 : vector<65x256xf32>
    %26 = math.tanh %24 : vector<65x256xf32>
    %27 = vector.extract_strided_slice %25 {offsets = [0, 0], sizes = [64, 256], strides = [1, 1]} : vector<65x256xf32> to vector<64x256xf32>
    %28 = vector.extract_strided_slice %25 {offsets = [1, 0], sizes = [64, 256], strides = [1, 1]} : vector<65x256xf32> to vector<64x256xf32>
    %29 = arith.subf %27, %28 : vector<64x256xf32>
    %30 = vector.extract_strided_slice %26 {offsets = [0, 0], sizes = [64, 256], strides = [1, 1]} : vector<65x256xf32> to vector<64x256xf32>
    %31 = vector.extract_strided_slice %26 {offsets = [1, 0], sizes = [64, 256], strides = [1, 1]} : vector<65x256xf32> to vector<64x256xf32>
    %32 = arith.subf %30, %31 : vector<64x256xf32>
    %cst_7 = arith.constant dense<0.000000e+00> : vector<64x64xf32>
    %33 = tpu.matmul %29, %32, %cst_7 {dimension_numbers = #tpu.dot_dimension_numbers<[1], [1], [0], [0], [0, 0, 1, 0], [], []>} : vector<64x256xf32>, vector<64x256xf32>, vector<64x64xf32> -> vector<64x64xf32>
    %34 = arith.index_cast %c0_i32_3 : i32 to index
    %c0_8 = arith.constant 0 : index
    %c0_9 = arith.constant 0 : index
    %35 = vector.load %arg5[%34, %c0_8, %c0_9] : memref<2x64x64xf32, #tpu.memory_space<vmem>>, vector<1x64x64xf32>
    %36 = vector.shape_cast %35 : vector<1x64x64xf32> to vector<64x64xf32>
    %37 = arith.addf %36, %33 : vector<64x64xf32>
    %38 = arith.index_cast %c0_i32_3 : i32 to index
    %c0_10 = arith.constant 0 : index
    %c0_11 = arith.constant 0 : index
    %39 = vector.load %arg5[%38, %c0_10, %c0_11] : memref<2x64x64xf32, #tpu.memory_space<vmem>>, vector<1x64x64xf32>
    %40 = vector.shape_cast %39 : vector<1x64x64xf32> to vector<64x64xf32>
    %41 = vector.shape_cast %37 : vector<64x64xf32> to vector<1x64x64xf32>
    tpu.vector_store %arg5[%38, %c0_10, %c0_11], %41 {strides = array<i32>} : memref<2x64x64xf32, #tpu.memory_space<vmem>>, vector<1x64x64xf32>,
    %c1_i32 = arith.constant 1 : i32
    %42 = arith.index_cast %c1_i32 : i32 to index
    %c0_12 = arith.constant 0 : index
    %43 = vector.load %arg2[%42, %c0_12] : memref<2x256xf32, #tpu.memory_space<vmem>>, vector<1x256xf32>
    %cst_13 = arith.constant 5.000000e+00 : f32
    %44 = vector.broadcast %cst_13 : f32 to vector<1x256xf32>
    %45 = arith.mulf %44, %43 : vector<1x256xf32>
    %46 = arith.index_cast %c1_i32 : i32 to index
    %c0_14 = arith.constant 0 : index
    %47 = vector.load %arg3[%46, %c0_14] : memref<2x256xf32, #tpu.memory_space<vmem>>, vector<1x256xf32>
    %cst_15 = arith.constant 5.000000e+00 : f32
    %48 = vector.broadcast %cst_15 : f32 to vector<1x256xf32>
    %49 = arith.mulf %48, %47 : vector<1x256xf32>
    %50 = vector.broadcast %45 : vector<1x256xf32> to vector<65x256xf32>
    %51 = vector.broadcast %10 : vector<65x1xf32> to vector<65x256xf32>
    %52 = arith.subf %50, %51 : vector<65x256xf32>
    %53 = vector.broadcast %49 : vector<1x256xf32> to vector<65x256xf32>
    %54 = vector.broadcast %10 : vector<65x1xf32> to vector<65x256xf32>
    %55 = arith.subf %53, %54 : vector<65x256xf32>
    %56 = math.tanh %52 : vector<65x256xf32>
    %57 = math.tanh %55 : vector<65x256xf32>
    %58 = vector.extract_strided_slice %56 {offsets = [0, 0], sizes = [64, 256], strides = [1, 1]} : vector<65x256xf32> to vector<64x256xf32>
    %59 = vector.extract_strided_slice %56 {offsets = [1, 0], sizes = [64, 256], strides = [1, 1]} : vector<65x256xf32> to vector<64x256xf32>
    %60 = arith.subf %58, %59 : vector<64x256xf32>
    %61 = vector.extract_strided_slice %57 {offsets = [0, 0], sizes = [64, 256], strides = [1, 1]} : vector<65x256xf32> to vector<64x256xf32>
    %62 = vector.extract_strided_slice %57 {offsets = [1, 0], sizes = [64, 256], strides = [1, 1]} : vector<65x256xf32> to vector<64x256xf32>
    %63 = arith.subf %61, %62 : vector<64x256xf32>
    %cst_16 = arith.constant dense<0.000000e+00> : vector<64x64xf32>
    %64 = tpu.matmul %60, %63, %cst_16 {dimension_numbers = #tpu.dot_dimension_numbers<[1], [1], [0], [0], [0, 0, 1, 0], [], []>} : vector<64x256xf32>, vector<64x256xf32>, vector<64x64xf32> -> vector<64x64xf32>
    %65 = arith.index_cast %c1_i32 : i32 to index
    %c0_17 = arith.constant 0 : index
    %c0_18 = arith.constant 0 : index
    %66 = vector.load %arg5[%65, %c0_17, %c0_18] : memref<2x64x64xf32, #tpu.memory_space<vmem>>, vector<1x64x64xf32>
    %67 = vector.shape_cast %66 : vector<1x64x64xf32> to vector<64x64xf32>
    %68 = arith.addf %67, %64 : vector<64x64xf32>
    %69 = arith.index_cast %c1_i32 : i32 to index
    %c0_19 = arith.constant 0 : index
    %c0_20 = arith.constant 0 : index
    %70 = vector.load %arg5[%69, %c0_19, %c0_20] : memref<2x64x64xf32, #tpu.memory_space<vmem>>, vector<1x64x64xf32>
    %71 = vector.shape_cast %70 : vector<1x64x64xf32> to vector<64x64xf32>
    %72 = vector.shape_cast %68 : vector<64x64xf32> to vector<1x64x64xf32>
    tpu.vector_store %arg5[%69, %c0_19, %c0_20], %72 {strides = array<i32>} : memref<2x64x64xf32, #tpu.memory_space<vmem>>, vector<1x64x64xf32>,
    %c2_i32 = arith.constant 2 : i32
    %c0_i32_21 = arith.constant 0 : i32
    %73 = arith.cmpi eq, %arg1, %c0_i32_21 : i32
    %74 = arith.extui %73 : i1 to i32
    %c0_i32_22 = arith.constant 0 : i32
    %75 = arith.cmpi ne, %74, %c0_i32_22 : i32
    scf.if %75 {
      %c0_23 = arith.constant 0 : index
      %c0_24 = arith.constant 0 : index
      %c0_25 = arith.constant 0 : index
      %76 = vector.load %arg5[%c0_23, %c0_24, %c0_25] : memref<2x64x64xf32, #tpu.memory_space<vmem>>, vector<2x64x64xf32>
      %cst_26 = arith.constant 2.500000e-01 : f32
      %77 = vector.broadcast %cst_26 : f32 to vector<2x64x64xf32>
      %78 = arith.mulf %77, %76 : vector<2x64x64xf32>
      %c0_27 = arith.constant 0 : index
      %c0_28 = arith.constant 0 : index
      %c0_29 = arith.constant 0 : index
      %79 = vector.load %arg4[%c0_27, %c0_28, %c0_29] : memref<2x64x64xf32, #tpu.memory_space<vmem>>, vector<2x64x64xf32>
      tpu.vector_store %arg4[%c0_27, %c0_28, %c0_29], %78 {strides = array<i32>} : memref<2x64x64xf32, #tpu.memory_space<vmem>>, vector<2x64x64xf32>,
    } else {
    }
    return
  }
  func.func @transform_0(%arg0: i32, %arg1: i32) -> (i32, i32) {
    %c0_i32 = arith.constant 0 : i32
    return %arg0, %arg1 : i32, i32
  }
  func.func @transform_1(%arg0: i32, %arg1: i32) -> (i32, i32) {
    %c0_i32 = arith.constant 0 : i32
    return %arg0, %arg1 : i32, i32
  }
  func.func @transform_2(%arg0: i32, %arg1: i32) -> (i32, i32, i32) {
    %c0_i32 = arith.constant 0 : i32
    %c0_i32_0 = arith.constant 0 : i32
    %c0_i32_1 = arith.constant 0 : i32
    return %arg0, %c0_i32, %c0_i32_0 : i32, i32, i32
  }
}

</mosaic_0001>

<llo_original>
// kernel: tpu_custom_call.1
$region0: #{tpu_custom_call.1}
  #allocation0 [shape = 'u32[]', space=smem, size = 0x4, offset = 0x4, fixed_abs, tag = 'smem constant byte address 0x4 - core index']
  #allocation1 [shape = 'u32[72,128]{1,0:T(1,128)}', space=vmem, size = 0x9000, scoped, tag = 'internal scratch']
  #allocation2 [shape = 'f32[2,64,64]{2,1,0:T(8,128)}', space=vmem, size = 0x10000, scoped, tag = 'scratch operand']
  %s0 = inlined_call_operand.hbm [shape: f32[2,256], index: 0, kind: input, shape index: {}]
  %s1 = inlined_call_operand.hbm [shape: f32[2,256], index: 1, kind: input, shape index: {}]
  %s2 = inlined_call_operand.hbm [shape: f32[2,64,64], index: 2, kind: output, shape index: {}]
  %s3 = sld [smem:[#allocation0]]
  $region34: #{tpu_custom_call.1} parent=0
    _
  %s5 = ssub.s32 1, %s3
  %s6 = scalar_select 0, %s5, %s3
  $region1: #{tpu_custom_call.1} parent=0
    #allocation3 [shape = 'u8[2048]{0}', space=vmem, size = 0x800, scoped, tag = 'input window, operand 0, single buffered']
    #allocation4 [shape = 's32[1]{0}', space=sflag, size = 0x4, scoped, tag = 'scoped memory for tpu_custom_call.1']
    #allocation5 [shape = 's32[1]{0}', space=sflag, size = 0x4, scoped, tag = 'scoped memory for tpu_custom_call.1']
    #allocation6 [shape = 'u8[2048]{0}', space=vmem, size = 0x800, scoped, tag = 'input window, operand 1, single buffered']
    #allocation7 [shape = 's32[1]{0}', space=sflag, size = 0x4, scoped, tag = 'scoped memory for tpu_custom_call.1']
    #allocation8 [shape = 'u8[65536]{0}', space=vmem, size = 0x10000, scoped, tag = 'output window, operand 0, single buffered']
    %7 = vsyncpa [#allocation4], 0
    %8 = vsyncpa [#allocation7], 0
    %9 = vsyncpa [#allocation5], 0
    // Predicated region
    $region2: #{tpu_custom_call.1} parent=1 // pred_check
      _
    $region3: #{tpu_custom_call.1} parent=1 // pred_check_branch
      %11 = sbr.rel (0) target = $region5
    $region4: #{tpu_custom_call.1} parent=1 // pred_region
      %13 = vsyncadd [#allocation4], 0
      %s15 = sshll.u32 %s0, 4
      %s16 = int_to_ptr.hbm [resolvable:$true] %s15
      %s17 = sshll.u32 [#allocation3], 4
      %s18 = int_to_ptr.vmem [resolvable:$true] %s17
      %20 = dma.hbm_to_vmem [thread:$0]  %s16, 64, %s18, [#allocation4]
    $region5: #{tpu_custom_call.1} parent=1 // pred_fallthru
      _
    // Predicated region
    $region6: #{tpu_custom_call.1} parent=1 // pred_check
      _
    $region7: #{tpu_custom_call.1} parent=1 // pred_check_branch
      %22 = sbr.rel (0) target = $region9
    $region8: #{tpu_custom_call.1} parent=1 // pred_region
      %24 = vsyncadd [#allocation7], 0
      %s26 = sshll.u32 %s1, 4
      %s27 = int_to_ptr.hbm [resolvable:$true] %s26
      %s28 = sshll.u32 [#allocation6], 4
      %s29 = int_to_ptr.vmem [resolvable:$true] %s28
      %31 = dma.hbm_to_vmem [thread:$0]  %s27, 64, %s29, [#allocation7]
    $region9: #{tpu_custom_call.1} parent=1 // pred_fallthru
      _
    // Predicated region
    $region10: #{tpu_custom_call.1} parent=1 // pred_check
      _
    $region11: #{tpu_custom_call.1} parent=1 // pred_check_branch
      %33 = sbr.rel (0) target = $region13
    $region12: #{tpu_custom_call.1} parent=1 // pred_region
      %35 = dma.done [#allocation4], 64
    $region13: #{tpu_custom_call.1} parent=1 // pred_fallthru
      _
    // Predicated region
    $region14: #{tpu_custom_call.1} parent=1 // pred_check
      _
    $region15: #{tpu_custom_call.1} parent=1 // pred_check_branch
      %37 = sbr.rel (0) target = $region17
    $region16: #{tpu_custom_call.1} parent=1 // pred_region
      %39 = dma.done [#allocation7], 64
    $region17: #{tpu_custom_call.1} parent=1 // pred_fallthru
      _
    %p40 = scmp.eq.s32.totalorder 0, 0
    // Predicated region
    $region18: #{tpu_custom_call.1} parent=1 // pred_check
      %p41 = pneg %p40
    $region19: #{tpu_custom_call.1} parent=1 // pred_check_branch
      %43 = sbr.rel (%p41) target = $region21
    $region20: #{tpu_custom_call.1} parent=1 // pred_region
      %vm44 = vcmask 523264
      %45 = vst.msk [vmem:[#allocation2] sm:$0xff] %vm44, 0.0
      %46 = vst.msk [vmem:[#allocation2 + $0x8] sm:$0xff] %vm44, 0.0
      %47 = vst.msk [vmem:[#allocation2 + $0x10] sm:$0xff] %vm44, 0.0
      %48 = vst.msk [vmem:[#allocation2 + $0x18] sm:$0xff] %vm44, 0.0
      %49 = vst.msk [vmem:[#allocation2 + $0x20] sm:$0xff] %vm44, 0.0
      %50 = vst.msk [vmem:[#allocation2 + $0x28] sm:$0xff] %vm44, 0.0
      %51 = vst.msk [vmem:[#allocation2 + $0x30] sm:$0xff] %vm44, 0.0
      %52 = vst.msk [vmem:[#allocation2 + $0x38] sm:$0xff] %vm44, 0.0
      %53 = vst.msk [vmem:[#allocation2 + $0x40] sm:$0xff] %vm44, 0.0
      %54 = vst.msk [vmem:[#allocation2 + $0x48] sm:$0xff] %vm44, 0.0
      %55 = vst.msk [vmem:[#allocation2 + $0x50] sm:$0xff] %vm44, 0.0
      %56 = vst.msk [vmem:[#allocation2 + $0x58] sm:$0xff] %vm44, 0.0
      %57 = vst.msk [vmem:[#allocation2 + $0x60] sm:$0xff] %vm44, 0.0
      %58 = vst.msk [vmem:[#allocation2 + $0x68] sm:$0xff] %vm44, 0.0
      %59 = vst.msk [vmem:[#allocation2 + $0x70] sm:$0xff] %vm44, 0.0
      %60 = vst.msk [vmem:[#allocation2 + $0x78] sm:$0xff] %vm44, 0.0
    $region21: #{tpu_custom_call.1} parent=1 // pred_fallthru
      _
    %v61 = vlaneseq
    %v62 = vshrl.u32 %v61, 7
    %v63 = vadd.s32 %v62, 8
    %v64 = vadd.s32 %v62, 16
    %v65 = vadd.s32 %v62, 24
    %v66 = vadd.s32 %v62, 32
    %v67 = vadd.s32 %v62, 40
    %v68 = vadd.s32 %v62, 48
    %v69 = vadd.s32 %v62, 56
    %v70 = vadd.s32 %v62, 64
    %v71 = vcvt.s32.f32 %v62
    %v72 = vcvt.s32.f32 %v63
    %v73 = vcvt.s32.f32 %v64
    %v74 = vcvt.s32.f32 %v65
    %v75 = vcvt.s32.f32 %v66
    %v76 = vcvt.s32.f32 %v67
    %v77 = vcvt.s32.f32 %v68
    %v78 = vcvt.s32.f32 %v69
    %v79 = vcvt.s32.f32 %v70
    %v80 = vmul.f32 %v71, 0.015625
    %v81 = vmul.f32 %v72, 0.015625
    %v82 = vmul.f32 %v73, 0.015625
    %v83 = vmul.f32 %v74, 0.015625
    %v84 = vmul.f32 %v75, 0.015625
    %v85 = vmul.f32 %v76, 0.015625
    %v86 = vmul.f32 %v77, 0.015625
    %v87 = vmul.f32 %v78, 0.015625
    %v88 = vmul.f32 %v79, 0.015625
    %v89 = vadd.f32 %v80, 0.0
    %v90 = vadd.f32 %v81, 0.0
    %v91 = vadd.f32 %v82, 0.0
    %v92 = vadd.f32 %v83, 0.0
    %v93 = vadd.f32 %v84, 0.0
    %v94 = vadd.f32 %v85, 0.0
    %v95 = vadd.f32 %v86, 0.0
    %v96 = vadd.f32 %v87, 0.0
    %v97 = vadd.f32 %v88, 0.0
    %v98 = vmul.f32 %v89, 5.0
    %v99 = vmul.f32 %v90, 5.0
    %v100 = vmul.f32 %v91, 5.0
    %v101 = vmul.f32 %v92, 5.0
    %v102 = vmul.f32 %v93, 5.0
    %v103 = vmul.f32 %v94, 5.0
    %v104 = vmul.f32 %v95, 5.0
    %v105 = vmul.f32 %v96, 5.0
    %v106 = vmul.f32 %v97, 5.0
    %v107 = vld [vmem:[#allocation3] ss:$2 sm:$0x3]
    %v108 = vmul.f32 %v107, 5.0
    %v109 = vld [vmem:[#allocation6] ss:$2 sm:$0x3]
    %v110 = vmul.f32 %v109, 5.0
    %v112 = vperm.slane %v108, 0
    %v113 = vperm.slane %v108, 1
    %v116 = vsub.f32 %v112, %v98
    %v117 = vsub.f32 %v113, %v98
    %v118 = vsub.f32 %v112, %v99
    %v119 = vsub.f32 %v113, %v99
    %v120 = vsub.f32 %v112, %v100
    %v121 = vsub.f32 %v113, %v100
    %v122 = vsub.f32 %v112, %v101
    %v123 = vsub.f32 %v113, %v101
    %v124 = vsub.f32 %v112, %v102
    %v125 = vsub.f32 %v113, %v102
    %v126 = vsub.f32 %v112, %v103
    %v127 = vsub.f32 %v113, %v103
    %v128 = vsub.f32 %v112, %v104
    %v129 = vsub.f32 %v113, %v104
    %v130 = vsub.f32 %v112, %v105
    %v131 = vsub.f32 %v113, %v105
    %v132 = vsub.f32 %v112, %v106
    %v133 = vsub.f32 %v113, %v106
    %v135 = vperm.slane %v110, 0
    %v136 = vperm.slane %v110, 1
    %v139 = vsub.f32 %v135, %v98
    %v140 = vsub.f32 %v136, %v98
    %v141 = vsub.f32 %v135, %v99
    %v142 = vsub.f32 %v136, %v99
    %v143 = vsub.f32 %v135, %v100
    %v144 = vsub.f32 %v136, %v100
    %v145 = vsub.f32 %v135, %v101
    %v146 = vsub.f32 %v136, %v101
    %v147 = vsub.f32 %v135, %v102
    %v148 = vsub.f32 %v136, %v102
    %v149 = vsub.f32 %v135, %v103
    %v150 = vsub.f32 %v136, %v103
    %v151 = vsub.f32 %v135, %v104
    %v152 = vsub.f32 %v136, %v104
    %v153 = vsub.f32 %v135, %v105
    %v154 = vsub.f32 %v136, %v105
    %v155 = vsub.f32 %v135, %v106
    %v156 = vsub.f32 %v136, %v106
    %v157 = vtanh.pop %v116
    %v158 = vtanh.pop %v117
    %v159 = vtanh.pop %v118
    %v160 = vtanh.pop %v119
    %v161 = vtanh.pop %v120
    %v162 = vtanh.pop %v121
    %v163 = vtanh.pop %v122
    %v164 = vtanh.pop %v123
    %v165 = vtanh.pop %v124
    %v166 = vtanh.pop %v125
    %v167 = vtanh.pop %v126
    %v168 = vtanh.pop %v127
    %v169 = vtanh.pop %v128
    %v170 = vtanh.pop %v129
    %v171 = vtanh.pop %v130
    %v172 = vtanh.pop %v131
    %v173 = vtanh.pop %v132
    %v174 = vtanh.pop %v133
    %v175 = vtanh.pop %v139
    %v176 = vtanh.pop %v140
    %v177 = vtanh.pop %v141
    %v178 = vtanh.pop %v142
    %v179 = vtanh.pop %v143
    %v180 = vtanh.pop %v144
    %v181 = vtanh.pop %v145
    %v182 = vtanh.pop %v146
    %v183 = vtanh.pop %v147
    %v184 = vtanh.pop %v148
    %v185 = vtanh.pop %v149
    %v186 = vtanh.pop %v150
    %v187 = vtanh.pop %v151
    %v188 = vtanh.pop %v152
    %v189 = vtanh.pop %v153
    %v190 = vtanh.pop %v154
    %v191 = vtanh.pop %v155
    %v192 = vtanh.pop %v156
    %vm211 = vcmask 1046528
    %v212 = vrot.slane %v157, 1
    %v213 = vrot.slane %v159, 1
    %v214 = vsel %vm211, %v212, %v213
    %v215 = vrot.slane %v158, 1
    %v216 = vrot.slane %v160, 1
    %v217 = vsel %vm211, %v215, %v216
    %v218 = vrot.slane %v161, 1
    %v219 = vsel %vm211, %v213, %v218
    %v220 = vrot.slane %v162, 1
    %v221 = vsel %vm211, %v216, %v220
    %v222 = vrot.slane %v163, 1
    %v223 = vsel %vm211, %v218, %v222
    %v224 = vrot.slane %v164, 1
    %v225 = vsel %vm211, %v220, %v224
    %v226 = vrot.slane %v165, 1
    %v227 = vsel %vm211, %v222, %v226
    %v228 = vrot.slane %v166, 1
    %v229 = vsel %vm211, %v224, %v228
    %v230 = vrot.slane %v167, 1
    %v231 = vsel %vm211, %v226, %v230
    %v232 = vrot.slane %v168, 1
    %v233 = vsel %vm211, %v228, %v232
    %v234 = vrot.slane %v169, 1
    %v235 = vsel %vm211, %v230, %v234
    %v236 = vrot.slane %v170, 1
    %v237 = vsel %vm211, %v232, %v236
    %v238 = vrot.slane %v171, 1
    %v239 = vsel %vm211, %v234, %v238
    %v240 = vrot.slane %v172, 1
    %v241 = vsel %vm211, %v236, %v240
    %v242 = vrot.slane %v173, 1
    %v243 = vsel %vm211, %v238, %v242
    %v244 = vrot.slane %v174, 1
    %v245 = vsel %vm211, %v240, %v244
    %v262 = vsub.f32 %v157, %v214
    %v263 = vsub.f32 %v158, %v217
    %v264 = vsub.f32 %v159, %v219
    %v265 = vsub.f32 %v160, %v221
    %v266 = vsub.f32 %v161, %v223
    %v267 = vsub.f32 %v162, %v225
    %v268 = vsub.f32 %v163, %v227
    %v269 = vsub.f32 %v164, %v229
    %v270 = vsub.f32 %v165, %v231
    %v271 = vsub.f32 %v166, %v233
    %v272 = vsub.f32 %v167, %v235
    %v273 = vsub.f32 %v168, %v237
    %v274 = vsub.f32 %v169, %v239
    %v275 = vsub.f32 %v170, %v241
    %v276 = vsub.f32 %v171, %v243
    %v277 = vsub.f32 %v172, %v245
    %v296 = vrot.slane %v175, 1
    %v297 = vrot.slane %v177, 1
    %v298 = vsel %vm211, %v296, %v297
    %v299 = vrot.slane %v176, 1
    %v300 = vrot.slane %v178, 1
    %v301 = vsel %vm211, %v299, %v300
    %v302 = vrot.slane %v179, 1
    %v303 = vsel %vm211, %v297, %v302
    %v304 = vrot.slane %v180, 1
    %v305 = vsel %vm211, %v300, %v304
    %v306 = vrot.slane %v181, 1
    %v307 = vsel %vm211, %v302, %v306
    %v308 = vrot.slane %v182, 1
    %v309 = vsel %vm211, %v304, %v308
    %v310 = vrot.slane %v183, 1
    %v311 = vsel %vm211, %v306, %v310
    %v312 = vrot.slane %v184, 1
    %v313 = vsel %vm211, %v308, %v312
    %v314 = vrot.slane %v185, 1
    %v315 = vsel %vm211, %v310, %v314
    %v316 = vrot.slane %v186, 1
    %v317 = vsel %vm211, %v312, %v316
    %v318 = vrot.slane %v187, 1
    %v319 = vsel %vm211, %v314, %v318
    %v320 = vrot.slane %v188, 1
    %v321 = vsel %vm211, %v316, %v320
    %v322 = vrot.slane %v189, 1
    %v323 = vsel %vm211, %v318, %v322
    %v324 = vrot.slane %v190, 1
    %v325 = vsel %vm211, %v320, %v324
    %v326 = vrot.slane %v191, 1
    %v327 = vsel %vm211, %v322, %v326
    %v328 = vrot.slane %v192, 1
    %v329 = vsel %vm211, %v324, %v328
    %v346 = vsub.f32 %v175, %v298
    %v347 = vsub.f32 %v176, %v301
    %v348 = vsub.f32 %v177, %v303
    %v349 = vsub.f32 %v178, %v305
    %v350 = vsub.f32 %v179, %v307
    %v351 = vsub.f32 %v180, %v309
    %v352 = vsub.f32 %v181, %v311
    %v353 = vsub.f32 %v182, %v313
    %v354 = vsub.f32 %v183, %v315
    %v355 = vsub.f32 %v184, %v317
    %v356 = vsub.f32 %v185, %v319
    %v357 = vsub.f32 %v186, %v321
    %v358 = vsub.f32 %v187, %v323
    %v359 = vsub.f32 %v188, %v325
    %v360 = vsub.f32 %v189, %v327
    %v361 = vsub.f32 %v190, %v329
    %362 = vmatpush.xpose.msra.mxu0 0.0
    %363 = vmatpush.xpose.msra.mxu0 0.0
    %364 = vmatpush.xpose.msra.mxu0 0.0
    %365 = vmatpush.xpose.msra.mxu0 0.0
    %366 = vmatpush.xpose.msra.mxu0 0.0
    %367 = vmatpush.xpose.msra.mxu0 0.0
    %368 = vmatpush.xpose.msra.mxu0 0.0
    %369 = vmatpush.xpose.msra.mxu0 0.0
    %370 = vmatpush.xpose.msra.mxu0 %v360
    %371 = vmatpush.xpose.msra.mxu0 %v358
    %372 = vmatpush.xpose.msra.mxu0 %v356
    %373 = vmatpush.xpose.msra.mxu0 %v354
    %374 = vmatpush.xpose.msra.mxu0 %v352
    %375 = vmatpush.xpose.msra.mxu0 %v350
    %376 = vmatpush.xpose.msra.mxu0 %v348
    %377 = vmatpush.xpose.msra.mxu0 %v346
    %378 = vmatmul.f32.gmra.mxu0 %v262
    %v379 = vpop.f32.mrf.mxu0
    %v380 = vadd.f32 0.0, %v379
    %381 = vmatmul.f32.gmra.mxu0 %v264
    %v382 = vpop.f32.mrf.mxu0
    %v383 = vadd.f32 0.0, %v382
    %384 = vmatmul.f32.gmra.mxu0 %v266
    %v385 = vpop.f32.mrf.mxu0
    %v386 = vadd.f32 0.0, %v385
    %387 = vmatmul.f32.gmra.mxu0 %v268
    %v388 = vpop.f32.mrf.mxu0
    %v389 = vadd.f32 0.0, %v388
    %390 = vmatmul.f32.gmra.mxu0 %v270
    %v391 = vpop.f32.mrf.mxu0
    %v392 = vadd.f32 0.0, %v391
    %393 = vmatmul.f32.gmra.mxu0 %v272
    %v394 = vpop.f32.mrf.mxu0
    %v395 = vadd.f32 0.0, %v394
    %396 = vmatmul.f32.gmra.mxu0 %v274
    %v397 = vpop.f32.mrf.mxu0
    %v398 = vadd.f32 0.0, %v397
    %399 = vmatmul.f32.gmra.mxu0 %v276
    %v400 = vpop.f32.mrf.mxu0
    %v401 = vadd.f32 0.0, %v400
    %402 = vdwg.mxu0
    %403 = vmatpush.xpose.msra.mxu0 0.0
    %404 = vmatpush.xpose.msra.mxu0 0.0
    %405 = vmatpush.xpose.msra.mxu0 0.0
    %406 = vmatpush.xpose.msra.mxu0 0.0
    %407 = vmatpush.xpose.msra.mxu0 0.0
    %408 = vmatpush.xpose.msra.mxu0 0.0
    %409 = vmatpush.xpose.msra.mxu0 0.0
    %410 = vmatpush.xpose.msra.mxu0 0.0
    %411 = vmatpush.xpose.msra.mxu0 %v361
    %412 = vmatpush.xpose.msra.mxu0 %v359
    %413 = vmatpush.xpose.msra.mxu0 %v357
    %414 = vmatpush.xpose.msra.mxu0 %v355
    %415 = vmatpush.xpose.msra.mxu0 %v353
    %416 = vmatpush.xpose.msra.mxu0 %v351
    %417 = vmatpush.xpose.msra.mxu0 %v349
    %418 = vmatpush.xpose.msra.mxu0 %v347
    %419 = vmatmul.f32.gmra.mxu0 %v263
    %v420 = vpop.f32.mrf.mxu0
    %v421 = vadd.f32 %v380, %v420
    %422 = vmatmul.f32.gmra.mxu0 %v265
    %v423 = vpop.f32.mrf.mxu0
    %v424 = vadd.f32 %v383, %v423
    %425 = vmatmul.f32.gmra.mxu0 %v267
    %v426 = vpop.f32.mrf.mxu0
    %v427 = vadd.f32 %v386, %v426
    %428 = vmatmul.f32.gmra.mxu0 %v269
    %v429 = vpop.f32.mrf.mxu0
    %v430 = vadd.f32 %v389, %v429
    %431 = vmatmul.f32.gmra.mxu0 %v271
    %v432 = vpop.f32.mrf.mxu0
    %v433 = vadd.f32 %v392, %v432
    %434 = vmatmul.f32.gmra.mxu0 %v273
    %v435 = vpop.f32.mrf.mxu0
    %v436 = vadd.f32 %v395, %v435
    %437 = vmatmul.f32.gmra.mxu0 %v275
    %v438 = vpop.f32.mrf.mxu0
    %v439 = vadd.f32 %v398, %v438
    %440 = vmatmul.f32.gmra.mxu0 %v277
    %v441 = vpop.f32.mrf.mxu0
    %v442 = vadd.f32 %v401, %v441
    %443 = vdwg.mxu0
    %v444 = vld [vmem:[#allocation2] sm:$0xff]
    %v445 = vld [vmem:[#allocation2 + $0x8] sm:$0xff]
    %v446 = vld [vmem:[#allocation2 + $0x10] sm:$0xff]
    %v447 = vld [vmem:[#allocation2 + $0x18] sm:$0xff]
    %v448 = vld [vmem:[#allocation2 + $0x20] sm:$0xff]
    %v449 = vld [vmem:[#allocation2 + $0x28] sm:$0xff]
    %v450 = vld [vmem:[#allocation2 + $0x30] sm:$0xff]
    %v451 = vld [vmem:[#allocation2 + $0x38] sm:$0xff]
    %v452 = vadd.f32 %v444, %v421
    %v453 = vadd.f32 %v445, %v424
    %v454 = vadd.f32 %v446, %v427
    %v455 = vadd.f32 %v447, %v430
    %v456 = vadd.f32 %v448, %v433
    %v457 = vadd.f32 %v449, %v436
    %v458 = vadd.f32 %v450, %v439
    %v459 = vadd.f32 %v451, %v442
    %vm460 = vcmask 523264
    %461 = vst.msk [vmem:[#allocation2] sm:$0xff] %vm460, %v452
    %462 = vst.msk [vmem:[#allocation2 + $0x8] sm:$0xff] %vm460, %v453
    %463 = vst.msk [vmem:[#allocation2 + $0x10] sm:$0xff] %vm460, %v454
    %464 = vst.msk [vmem:[#allocation2 + $0x18] sm:$0xff] %vm460, %v455
    %465 = vst.msk [vmem:[#allocation2 + $0x20] sm:$0xff] %vm460, %v456
    %466 = vst.msk [vmem:[#allocation2 + $0x28] sm:$0xff] %vm460, %v457
    %467 = vst.msk [vmem:[#allocation2 + $0x30] sm:$0xff] %vm460, %v458
    %468 = vst.msk [vmem:[#allocation2 + $0x38] sm:$0xff] %vm460, %v459
    %s469 = scalar_lea.vmem [#allocation3], 1
    %v470 = vld [vmem:[%s469] ss:$2 sm:$0x3]
    %v471 = vmul.f32 %v470, 5.0
    %s472 = scalar_lea.vmem [#allocation6], 1
    %v473 = vld [vmem:[%s472] ss:$2 sm:$0x3]
    %v474 = vmul.f32 %v473, 5.0
    %v476 = vperm.slane %v471, 0
    %v477 = vperm.slane %v471, 1
    %v480 = vsub.f32 %v476, %v98
    %v481 = vsub.f32 %v477, %v98
    %v482 = vsub.f32 %v476, %v99
    %v483 = vsub.f32 %v477, %v99
    %v484 = vsub.f32 %v476, %v100
    %v485 = vsub.f32 %v477, %v100
    %v486 = vsub.f32 %v476, %v101
    %v487 = vsub.f32 %v477, %v101
    %v488 = vsub.f32 %v476, %v102
    %v489 = vsub.f32 %v477, %v102
    %v490 = vsub.f32 %v476, %v103
    %v491 = vsub.f32 %v477, %v103
    %v492 = vsub.f32 %v476, %v104
    %v493 = vsub.f32 %v477, %v104
    %v494 = vsub.f32 %v476, %v105
    %v495 = vsub.f32 %v477, %v105
    %v496 = vsub.f32 %v476, %v106
    %v497 = vsub.f32 %v477, %v106
    %v499 = vperm.slane %v474, 0
    %v500 = vperm.slane %v474, 1
    %v503 = vsub.f32 %v499, %v98
    %v504 = vsub.f32 %v500, %v98
    %v505 = vsub.f32 %v499, %v99
    %v506 = vsub.f32 %v500, %v99
    %v507 = vsub.f32 %v499, %v100
    %v508 = vsub.f32 %v500, %v100
    %v509 = vsub.f32 %v499, %v101
    %v510 = vsub.f32 %v500, %v101
    %v511 = vsub.f32 %v499, %v102
    %v512 = vsub.f32 %v500, %v102
    %v513 = vsub.f32 %v499, %v103
    %v514 = vsub.f32 %v500, %v103
    %v515 = vsub.f32 %v499, %v104
    %v516 = vsub.f32 %v500, %v104
    %v517 = vsub.f32 %v499, %v105
    %v518 = vsub.f32 %v500, %v105
    %v519 = vsub.f32 %v499, %v106
    %v520 = vsub.f32 %v500, %v106
    %v521 = vtanh.pop %v480
    %v522 = vtanh.pop %v481
    %v523 = vtanh.pop %v482
    %v524 = vtanh.pop %v483
    %v525 = vtanh.pop %v484
    %v526 = vtanh.pop %v485
    %v527 = vtanh.pop %v486
    %v528 = vtanh.pop %v487
    %v529 = vtanh.pop %v488
    %v530 = vtanh.pop %v489
    %v531 = vtanh.pop %v490
    %v532 = vtanh.pop %v491
    %v533 = vtanh.pop %v492
    %v534 = vtanh.pop %v493
    %v535 = vtanh.pop %v494
    %v536 = vtanh.pop %v495
    %v537 = vtanh.pop %v496
    %v538 = vtanh.pop %v497
    %v539 = vtanh.pop %v503
    %v540 = vtanh.pop %v504
    %v541 = vtanh.pop %v505
    %v542 = vtanh.pop %v506
    %v543 = vtanh.pop %v507
    %v544 = vtanh.pop %v508
    %v545 = vtanh.pop %v509
    %v546 = vtanh.pop %v510
    %v547 = vtanh.pop %v511
    %v548 = vtanh.pop %v512
    %v549 = vtanh.pop %v513
    %v550 = vtanh.pop %v514
    %v551 = vtanh.pop %v515
    %v552 = vtanh.pop %v516
    %v553 = vtanh.pop %v517
    %v554 = vtanh.pop %v518
    %v555 = vtanh.pop %v519
    %v556 = vtanh.pop %v520
    %v575 = vrot.slane %v521, 1
    %v576 = vrot.slane %v523, 1
    %v577 = vsel %vm211, %v575, %v576
    %v578 = vrot.slane %v522, 1
    %v579 = vrot.slane %v524, 1
    %v580 = vsel %vm211, %v578, %v579
    %v581 = vrot.slane %v525, 1
    %v582 = vsel %vm211, %v576, %v581
    %v583 = vrot.slane %v526, 1
    %v584 = vsel %vm211, %v579, %v583
    %v585 = vrot.slane %v527, 1
    %v586 = vsel %vm211, %v581, %v585
    %v587 = vrot.slane %v528, 1
    %v588 = vsel %vm211, %v583, %v587
    %v589 = vrot.slane %v529, 1
    %v590 = vsel %vm211, %v585, %v589
    %v591 = vrot.slane %v530, 1
    %v592 = vsel %vm211, %v587, %v591
    %v593 = vrot.slane %v531, 1
    %v594 = vsel %vm211, %v589, %v593
    %v595 = vrot.slane %v532, 1
    %v596 = vsel %vm211, %v591, %v595
    %v597 = vrot.slane %v533, 1
    %v598 = vsel %vm211, %v593, %v597
    %v599 = vrot.slane %v534, 1
    %v600 = vsel %vm211, %v595, %v599
    %v601 = vrot.slane %v535, 1
    %v602 = vsel %vm211, %v597, %v601
    %v603 = vrot.slane %v536, 1
    %v604 = vsel %vm211, %v599, %v603
    %v605 = vrot.slane %v537, 1
    %v606 = vsel %vm211, %v601, %v605
    %v607 = vrot.slane %v538, 1
    %v608 = vsel %vm211, %v603, %v607
    %v625 = vsub.f32 %v521, %v577
    %v626 = vsub.f32 %v522, %v580
    %v627 = vsub.f32 %v523, %v582
    %v628 = vsub.f32 %v524, %v584
    %v629 = vsub.f32 %v525, %v586
    %v630 = vsub.f32 %v526, %v588
    %v631 = vsub.f32 %v527, %v590
    %v632 = vsub.f32 %v528, %v592
    %v633 = vsub.f32 %v529, %v594
    %v634 = vsub.f32 %v530, %v596
    %v635 = vsub.f32 %v531, %v598
    %v636 = vsub.f32 %v532, %v600
    %v637 = vsub.f32 %v533, %v602
    %v638 = vsub.f32 %v534, %v604
    %v639 = vsub.f32 %v535, %v606
    %v640 = vsub.f32 %v536, %v608
    %v659 = vrot.slane %v539, 1
    %v660 = vrot.slane %v541, 1
    %v661 = vsel %vm211, %v659, %v660
    %v662 = vrot.slane %v540, 1
    %v663 = vrot.slane %v542, 1
    %v664 = vsel %vm211, %v662, %v663
    %v665 = vrot.slane %v543, 1
    %v666 = vsel %vm211, %v660, %v665
    %v667 = vrot.slane %v544, 1
    %v668 = vsel %vm211, %v663, %v667
    %v669 = vrot.slane %v545, 1
    %v670 = vsel %vm211, %v665, %v669
    %v671 = vrot.slane %v546, 1
    %v672 = vsel %vm211, %v667, %v671
    %v673 = vrot.slane %v547, 1
    %v674 = vsel %vm211, %v669, %v673
    %v675 = vrot.slane %v548, 1
    %v676 = vsel %vm211, %v671, %v675
    %v677 = vrot.slane %v549, 1
    %v678 = vsel %vm211, %v673, %v677
    %v679 = vrot.slane %v550, 1
    %v680 = vsel %vm211, %v675, %v679
    %v681 = vrot.slane %v551, 1
    %v682 = vsel %vm211, %v677, %v681
    %v683 = vrot.slane %v552, 1
    %v684 = vsel %vm211, %v679, %v683
    %v685 = vrot.slane %v553, 1
    %v686 = vsel %vm211, %v681, %v685
    %v687 = vrot.slane %v554, 1
    %v688 = vsel %vm211, %v683, %v687
    %v689 = vrot.slane %v555, 1
    %v690 = vsel %vm211, %v685, %v689
    %v691 = vrot.slane %v556, 1
    %v692 = vsel %vm211, %v687, %v691
    %v709 = vsub.f32 %v539, %v661
    %v710 = vsub.f32 %v540, %v664
    %v711 = vsub.f32 %v541, %v666
    %v712 = vsub.f32 %v542, %v668
    %v713 = vsub.f32 %v543, %v670
    %v714 = vsub.f32 %v544, %v672
    %v715 = vsub.f32 %v545, %v674
    %v716 = vsub.f32 %v546, %v676
    %v717 = vsub.f32 %v547, %v678
    %v718 = vsub.f32 %v548, %v680
    %v719 = vsub.f32 %v549, %v682
    %v720 = vsub.f32 %v550, %v684
    %v721 = vsub.f32 %v551, %v686
    %v722 = vsub.f32 %v552, %v688
    %v723 = vsub.f32 %v553, %v690
    %v724 = vsub.f32 %v554, %v692
    %725 = vmatpush.xpose.msra.mxu0 0.0
    %726 = vmatpush.xpose.msra.mxu0 0.0
    %727 = vmatpush.xpose.msra.mxu0 0.0
    %728 = vmatpush.xpose.msra.mxu0 0.0
    %729 = vmatpush.xpose.msra.mxu0 0.0
    %730 = vmatpush.xpose.msra.mxu0 0.0
    %731 = vmatpush.xpose.msra.mxu0 0.0
    %732 = vmatpush.xpose.msra.mxu0 0.0
    %733 = vmatpush.xpose.msra.mxu0 %v723
    %734 = vmatpush.xpose.msra.mxu0 %v721
    %735 = vmatpush.xpose.msra.mxu0 %v719
    %736 = vmatpush.xpose.msra.mxu0 %v717
    %737 = vmatpush.xpose.msra.mxu0 %v715
    %738 = vmatpush.xpose.msra.mxu0 %v713
    %739 = vmatpush.xpose.msra.mxu0 %v711
    %740 = vmatpush.xpose.msra.mxu0 %v709
    %741 = vmatmul.f32.gmra.mxu0 %v625
    %v742 = vpop.f32.mrf.mxu0
    %v743 = vadd.f32 0.0, %v742
    %744 = vmatmul.f32.gmra.mxu0 %v627
    %v745 = vpop.f32.mrf.mxu0
    %v746 = vadd.f32 0.0, %v745
    %747 = vmatmul.f32.gmra.mxu0 %v629
    %v748 = vpop.f32.mrf.mxu0
    %v749 = vadd.f32 0.0, %v748
    %750 = vmatmul.f32.gmra.mxu0 %v631
    %v751 = vpop.f32.mrf.mxu0
    %v752 = vadd.f32 0.0, %v751
    %753 = vmatmul.f32.gmra.mxu0 %v633
    %v754 = vpop.f32.mrf.mxu0
    %v755 = vadd.f32 0.0, %v754
    %756 = vmatmul.f32.gmra.mxu0 %v635
    %v757 = vpop.f32.mrf.mxu0
    %v758 = vadd.f32 0.0, %v757
    %759 = vmatmul.f32.gmra.mxu0 %v637
    %v760 = vpop.f32.mrf.mxu0
    %v761 = vadd.f32 0.0, %v760
    %762 = vmatmul.f32.gmra.mxu0 %v639
    %v763 = vpop.f32.mrf.mxu0
    %v764 = vadd.f32 0.0, %v763
    %765 = vdwg.mxu0
    %766 = vmatpush.xpose.msra.mxu0 0.0
    %767 = vmatpush.xpose.msra.mxu0 0.0
    %768 = vmatpush.xpose.msra.mxu0 0.0
    %769 = vmatpush.xpose.msra.mxu0 0.0
    %770 = vmatpush.xpose.msra.mxu0 0.0
    %771 = vmatpush.xpose.msra.mxu0 0.0
    %772 = vmatpush.xpose.msra.mxu0 0.0
    %773 = vmatpush.xpose.msra.mxu0 0.0
    %774 = vmatpush.xpose.msra.mxu0 %v724
    %775 = vmatpush.xpose.msra.mxu0 %v722
    %776 = vmatpush.xpose.msra.mxu0 %v720
    %777 = vmatpush.xpose.msra.mxu0 %v718
    %778 = vmatpush.xpose.msra.mxu0 %v716
    %779 = vmatpush.xpose.msra.mxu0 %v714
    %780 = vmatpush.xpose.msra.mxu0 %v712
    %781 = vmatpush.xpose.msra.mxu0 %v710
    %782 = vmatmul.f32.gmra.mxu0 %v626
    %v783 = vpop.f32.mrf.mxu0
    %v784 = vadd.f32 %v743, %v783
    %785 = vmatmul.f32.gmra.mxu0 %v628
    %v786 = vpop.f32.mrf.mxu0
    %v787 = vadd.f32 %v746, %v786
    %788 = vmatmul.f32.gmra.mxu0 %v630
    %v789 = vpop.f32.mrf.mxu0
    %v790 = vadd.f32 %v749, %v789
    %791 = vmatmul.f32.gmra.mxu0 %v632
    %v792 = vpop.f32.mrf.mxu0
    %v793 = vadd.f32 %v752, %v792
    %794 = vmatmul.f32.gmra.mxu0 %v634
    %v795 = vpop.f32.mrf.mxu0
    %v796 = vadd.f32 %v755, %v795
    %797 = vmatmul.f32.gmra.mxu0 %v636
    %v798 = vpop.f32.mrf.mxu0
    %v799 = vadd.f32 %v758, %v798
    %800 = vmatmul.f32.gmra.mxu0 %v638
    %v801 = vpop.f32.mrf.mxu0
    %v802 = vadd.f32 %v761, %v801
    %803 = vmatmul.f32.gmra.mxu0 %v640
    %v804 = vpop.f32.mrf.mxu0
    %v805 = vadd.f32 %v764, %v804
    %806 = vdwg.mxu0
    %s807 = scalar_lea.vmem [#allocation2], 64
    %v808 = vld [vmem:[%s807] sm:$0xff]
    %v809 = vld [vmem:[%s807 + $0x8] sm:$0xff]
    %v810 = vld [vmem:[%s807 + $0x10] sm:$0xff]
    %v811 = vld [vmem:[%s807 + $0x18] sm:$0xff]
    %v812 = vld [vmem:[%s807 + $0x20] sm:$0xff]
    %v813 = vld [vmem:[%s807 + $0x28] sm:$0xff]
    %v814 = vld [vmem:[%s807 + $0x30] sm:$0xff]
    %v815 = vld [vmem:[%s807 + $0x38] sm:$0xff]
    %v816 = vadd.f32 %v808, %v784
    %v817 = vadd.f32 %v809, %v787
    %v818 = vadd.f32 %v810, %v790
    %v819 = vadd.f32 %v811, %v793
    %v820 = vadd.f32 %v812, %v796
    %v821 = vadd.f32 %v813, %v799
    %v822 = vadd.f32 %v814, %v802
    %v823 = vadd.f32 %v815, %v805
    %824 = vst.msk [vmem:[%s807] sm:$0xff] %vm460, %v816
    %825 = vst.msk [vmem:[%s807 + $0x8] sm:$0xff] %vm460, %v817
    %826 = vst.msk [vmem:[%s807 + $0x10] sm:$0xff] %vm460, %v818
    %827 = vst.msk [vmem:[%s807 + $0x18] sm:$0xff] %vm460, %v819
    %828 = vst.msk [vmem:[%s807 + $0x20] sm:$0xff] %vm460, %v820
    %829 = vst.msk [vmem:[%s807 + $0x28] sm:$0xff] %vm460, %v821
    %830 = vst.msk [vmem:[%s807 + $0x30] sm:$0xff] %vm460, %v822
    %831 = vst.msk [vmem:[%s807 + $0x38] sm:$0xff] %vm460, %v823
    // Predicated region
    $region22: #{tpu_custom_call.1} parent=1 // pred_check
      %p832 = pneg %p40
    $region23: #{tpu_custom_call.1} parent=1 // pred_check_branch
      %834 = sbr.rel (%p832) target = $region25
    $region24: #{tpu_custom_call.1} parent=1 // pred_region
      %v835 = vld [vmem:[#allocation2] sm:$0xff]
      %v836 = vld [vmem:[#allocation2 + $0x8] sm:$0xff]
      %v837 = vld [vmem:[#allocation2 + $0x10] sm:$0xff]
      %v838 = vld [vmem:[#allocation2 + $0x18] sm:$0xff]
      %v839 = vld [vmem:[#allocation2 + $0x20] sm:$0xff]
      %v840 = vld [vmem:[#allocation2 + $0x28] sm:$0xff]
      %v841 = vld [vmem:[#allocation2 + $0x30] sm:$0xff]
      %v842 = vld [vmem:[#allocation2 + $0x38] sm:$0xff]
      %v843 = vld [vmem:[#allocation2 + $0x40] sm:$0xff]
      %v844 = vld [vmem:[#allocation2 + $0x48] sm:$0xff]
      %v845 = vld [vmem:[#allocation2 + $0x50] sm:$0xff]
      %v846 = vld [vmem:[#allocation2 + $0x58] sm:$0xff]
      %v847 = vld [vmem:[#allocation2 + $0x60] sm:$0xff]
      %v848 = vld [vmem:[#allocation2 + $0x68] sm:$0xff]
      %v849 = vld [vmem:[#allocation2 + $0x70] sm:$0xff]
      %v850 = vld [vmem:[#allocation2 + $0x78] sm:$0xff]
      %v851 = vmul.f32 %v835, 0.25
      %v852 = vmul.f32 %v836, 0.25
      %v853 = vmul.f32 %v837, 0.25
      %v854 = vmul.f32 %v838, 0.25
      %v855 = vmul.f32 %v839, 0.25
      %v856 = vmul.f32 %v840, 0.25
      %v857 = vmul.f32 %v841, 0.25
      %v858 = vmul.f32 %v842, 0.25
      %v859 = vmul.f32 %v843, 0.25
      %v860 = vmul.f32 %v844, 0.25
      %v861 = vmul.f32 %v845, 0.25
      %v862 = vmul.f32 %v846, 0.25
      %v863 = vmul.f32 %v847, 0.25
      %v864 = vmul.f32 %v848, 0.25
      %v865 = vmul.f32 %v849, 0.25
      %v866 = vmul.f32 %v850, 0.25
      %867 = vst.msk [vmem:[#allocation8] sm:$0xff] %vm460, %v851
      %868 = vst.msk [vmem:[#allocation8 + $0x8] sm:$0xff] %vm460, %v852
      %869 = vst.msk [vmem:[#allocation8 + $0x10] sm:$0xff] %vm460, %v853
      %870 = vst.msk [vmem:[#allocation8 + $0x18] sm:$0xff] %vm460, %v854
      %871 = vst.msk [vmem:[#allocation8 + $0x20] sm:$0xff] %vm460, %v855
      %872 = vst.msk [vmem:[#allocation8 + $0x28] sm:$0xff] %vm460, %v856
      %873 = vst.msk [vmem:[#allocation8 + $0x30] sm:$0xff] %vm460, %v857
      %874 = vst.msk [vmem:[#allocation8 + $0x38] sm:$0xff] %vm460, %v858
      %875 = vst.msk [vmem:[#allocation8 + $0x40] sm:$0xff] %vm460, %v859
      %876 = vst.msk [vmem:[#allocation8 + $0x48] sm:$0xff] %vm460, %v860
      %877 = vst.msk [vmem:[#allocation8 + $0x50] sm:$0xff] %vm460, %v861
      %878 = vst.msk [vmem:[#allocation8 + $0x58] sm:$0xff] %vm460, %v862
      %879 = vst.msk [vmem:[#allocation8 + $0x60] sm:$0xff] %vm460, %v863
      %880 = vst.msk [vmem:[#allocation8 + $0x68] sm:$0xff] %vm460, %v864
      %881 = vst.msk [vmem:[#allocation8 + $0x70] sm:$0xff] %vm460, %v865
      %882 = vst.msk [vmem:[#allocation8 + $0x78] sm:$0xff] %vm460, %v866
    $region25: #{tpu_custom_call.1} parent=1 // pred_fallthru
      _
    // Predicated region
    $region26: #{tpu_custom_call.1} parent=1 // pred_check
      _
    $region27: #{tpu_custom_call.1} parent=1 // pred_check_branch
      %884 = sbr.rel (0) target = $region29
    $region28: #{tpu_custom_call.1} parent=1 // pred_region
      %886 = vsyncadd [#allocation5], 0
      %s887 = sshll.u32 [#allocation8], 4
      %s888 = int_to_ptr.vmem [resolvable:$true] %s887
      %s889 = sshll.u32 %s2, 4
      %s890 = int_to_ptr.hbm [resolvable:$true] %s889
      %895 = dma.vmem_to_hbm [thread:$0]  %s888, 2048, %s890, [#allocation5], 128, 128, 8
    $region29: #{tpu_custom_call.1} parent=1 // pred_fallthru
      _
    // Predicated region
    $region30: #{tpu_custom_call.1} parent=1 // pred_check
      _
    $region31: #{tpu_custom_call.1} parent=1 // pred_check_branch
      %897 = sbr.rel (0) target = $region33
    $region32: #{tpu_custom_call.1} parent=1 // pred_region
      %899 = dma.done [#allocation5], 2048
    $region33: #{tpu_custom_call.1} parent=1 // pred_fallthru
      _
    %900 = vsyncpa [#allocation4], 1
    %901 = vsyncpa [#allocation7], 1
    %902 = vsyncpa [#allocation5], 1

</llo_original>
